<compile_context>
chip_gen: v7x
topology: tpu7x:2x2x1
jax: 0.10.0
libtpu: 0.0.40
codegen_flags: <defaults>
</compile_context>

<pallas_src>
import functools

import jax
import jax.numpy as jnp
from jax import lax
from jax.experimental import pallas as pl
from jax.experimental.pallas import tpu as pltpu


def _fr_unit_kernel(x_ref, w_ref, b_ref, m_ref, o_ref, *, W):
    # x_ref: (1, C, P)   f32        flattened NCHW input (P = H*W); also the identity
    # w_ref: (9*CP, C)   bf16/f32   fused 3x3 weights, tap-major, rows padded C -> CP
    # b_ref: (C, 1)      f32        fused bias (w2 @ b1 + b2)
    # m_ref: (9, P)      f32        per-tap zero-padding boundary masks (1 = in bounds)
    # o_ref: (1, C, P)   f32
    C = x_ref.shape[1]
    P = x_ref.shape[2]
    CP = w_ref.shape[0] // 9

    x = x_ref[0]                                              # (C, P) f32

    # Single MXU push: channel mixing for all 9 taps at once -> (9*CP, P) f32.
    y = jnp.dot(w_ref[...], x.astype(w_ref.dtype),
                preferred_element_type=jnp.float32)

    # Spatial part of the 3x3 conv: shift each tap's response along the flattened
    # spatial axis (XLU roll) and zero the out-of-bounds contributions (VPU mul+add).
    conv = y[4 * CP:5 * CP, :]                                # center tap: no shift/mask
    for ky in range(3):
        for kx in range(3):
            t = ky * 3 + kx
            if t == 4:
                continue
            d = (ky - 1) * W + (kx - 1)                       # flat offset of this tap
            rolled = pltpu.roll(y[t * CP:(t + 1) * CP, :], (-d) % P, axis=1)
            conv = conv + rolled * m_ref[pl.ds(t, 1), :]

    # Fused bias + residual shortcut (f32), then channel-wise L2 normalization.
    ls = conv[:C, :] + b_ref[...] + x
    ss = jnp.sum(ls * ls, axis=0, keepdims=True)              # (1, P)
    o_ref[0] = ls * lax.rsqrt(jnp.maximum(ss, 1e-24))         # == ls / max(||ls||, 1e-12)


def fr_unit(x_nchw, w1_torch, b1, w2_torch, b2, *, matmul_dtype=jnp.bfloat16):
    """FRUnit forward.

    x_nchw:   (N, C, H, W) float32
    w1_torch: (C, C, 3, 3) conv1 weight, PyTorch [out, in, kh, kw] layout
    b1, b2:   (C,) biases
    w2_torch: (C, C, 1, 1) conv2 (1x1) weight
    matmul_dtype: MXU operand dtype (bf16 recommended on v6e/v7x; f32 for bit-tight
                  validation / v5e elementwise parity).
    """
    N, C, H, W = x_nchw.shape
    P = H * W
    CP = ((C + 7) // 8) * 8            # pad channel rows to the f32 sublane tile

    # ---- one-time algebraic fusion: conv2 o conv1 and both biases ----
    w2m = w2_torch[:, :, 0, 0]                                     # (C_out, C_mid)
    w_fused = jnp.einsum('qo,oiyx->qiyx', w2m, w1_torch)           # (C_out, C_in, 3, 3)
    wt = jnp.transpose(w_fused, (2, 3, 0, 1)).reshape(9, C, C)     # [tap, out, in]
    w_big = jnp.zeros((9, CP, C), jnp.float32).at[:, :C, :].set(wt)
    w_big = w_big.reshape(9 * CP, C).astype(matmul_dtype)
    b_all = (w2m @ b1 + b2).reshape(C, 1).astype(jnp.float32)

    # ---- per-tap boundary masks for the zero-padded 3x3 conv (tiny, fetched once) ----
    hh = jnp.arange(H, dtype=jnp.int32)
    ww = jnp.arange(W, dtype=jnp.int32)
    masks = []
    for ky in range(3):
        for kx in range(3):
            mh = ((hh + (ky - 1) >= 0) & (hh + (ky - 1) < H)).astype(jnp.float32)
            mw = ((ww + (kx - 1) >= 0) & (ww + (kx - 1) < W)).astype(jnp.float32)
            masks.append((mh[:, None] * mw[None, :]).reshape(P))
    m_all = jnp.stack(masks, axis=0)                               # (9, P)

    x_flat = x_nchw.reshape(N, C, P)           # contiguous collapse: no data movement

    kernel = functools.partial(_fr_unit_kernel, W=W)
    out = pl.pallas_call(
        kernel,
        out_shape=jax.ShapeDtypeStruct((N, C, P), jnp.float32),
        grid_spec=pltpu.PrefetchScalarGridSpec(
            num_scalar_prefetch=0,
            grid=(N,),
            in_specs=[
                pl.BlockSpec((1, C, P), lambda n: (n, 0, 0)),
                pl.BlockSpec((9 * CP, C), lambda n: (0, 0)),
                pl.BlockSpec((C, 1), lambda n: (0, 0)),
                pl.BlockSpec((9, P), lambda n: (0, 0)),
            ],
            out_specs=pl.BlockSpec((1, C, P), lambda n: (n, 0, 0)),
        ),
        compiler_params=pltpu.CompilerParams(
            dimension_semantics=("parallel",)),
    )(x_flat, w_big, b_all, m_all)

    return out.reshape(N, C, H, W)


def fr_unit_reference(x_nchw, w1_torch, b1, w2_torch, b2):
    """Plain-JAX reference (NCHW convs, same semantics as the PyTorch module)."""
    y = lax.conv_general_dilated(
        x_nchw, w1_torch, window_strides=(1, 1), padding=((1, 1), (1, 1)),
        dimension_numbers=("NCHW", "OIHW", "NCHW"))
    y = y + b1.reshape(1, -1, 1, 1)
    y = lax.conv_general_dilated(
        y, w2_torch, window_strides=(1, 1), padding=((0, 0), (0, 0)),
        dimension_numbers=("NCHW", "OIHW", "NCHW"))
    y = y + b2.reshape(1, -1, 1, 1)
    ls = y + x_nchw
    norm = jnp.sqrt(jnp.sum(ls * ls, axis=1, keepdims=True))
    return ls / jnp.maximum(norm, 1e-12)


if __name__ == "__main__":
    key = jax.random.PRNGKey(0)
    N, C, H, W = 2, 4, 16, 16

    k_x, k_w1, k_w2, k_b1, k_b2 = jax.random.split(key, 5)
    x = jax.random.normal(k_x, (N, C, H, W), jnp.float32)

    # init_type='normal' -> conv weights ~ N(0, 0.02); use small nonzero biases so the
    # fused-bias path is exercised numerically as well.
    gain = 0.02
    w1 = gain * jax.random.normal(k_w1, (C, C, 3, 3), jnp.float32)   # conv1 (3x3)
    w2 = gain * jax.random.normal(k_w2, (C, C, 1, 1), jnp.float32)   # conv2 (1x1)
    b1 = gain * jax.random.normal(k_b1, (C,), jnp.float32)
    b2 = gain * jax.random.normal(k_b2, (C,), jnp.float32)

    ref = fr_unit_reference(x, w1, b1, w2, b2)

    # f32 MXU operands: verifies the conv2/bias fusion and halo handling are exact.
    out_f32 = jax.block_until_ready(
        fr_unit(x, w1, b1, w2, b2, matmul_dtype=jnp.float32))
    assert out_f32.shape == (N, C, H, W)
    assert jnp.max(jnp.abs(out_f32 - ref)) < 1e-4, "f32 kernel mismatch vs reference"

    # Default bf16 MXU operands (v6e/v7x recommendation); residual/normalize stay f32,
    # so only the tiny conv contribution sees bf16 rounding.
    out_bf16 = jax.block_until_ready(fr_unit(x, w1, b1, w2, b2))
    assert out_bf16.shape == (N, C, H, W)
    assert jnp.max(jnp.abs(out_bf16 - ref)) < 5e-3, "bf16 kernel mismatch vs reference"

    print("KERNEL_OK")
</pallas_src>

<mosaic_0001>
module attributes {stable_mosaic.version = 11 : i64} {
  func.func @_fr_unit_kernel(%arg0: i32, %arg1: memref<1x4x256xf32, #tpu.memory_space<vmem>>, %arg2: memref<72x4xf32, #tpu.memory_space<vmem>>, %arg3: memref<4x1xf32, #tpu.memory_space<vmem>>, %arg4: memref<9x256xf32, #tpu.memory_space<vmem>>, %arg5: memref<1x4x256xf32, #tpu.memory_space<vmem>>) attributes {dimension_semantics = [#tpu.dimension_semantics<parallel>], iteration_bounds = array<i64: 2>, scalar_prefetch = 0 : i64, scratch_operands = 0 : i64, tpu.core_type = #tpu.core_type<tc>, window_params = [{transform_indices = @transform_0, window_bounds = array<i64: 1, 4, 256>}, {pipeline_mode = #tpu.pipeline_mode<synchronous>, transform_indices = @transform_1, window_bounds = array<i64: 72, 4>}, {pipeline_mode = #tpu.pipeline_mode<synchronous>, transform_indices = @transform_2, window_bounds = array<i64: 4, 1>}, {pipeline_mode = #tpu.pipeline_mode<synchronous>, transform_indices = @transform_3, window_bounds = array<i64: 9, 256>}, {transform_indices = @transform_4, window_bounds = array<i64: 1, 4, 256>}]} {
    %c0 = arith.constant 0 : index
    %c0_0 = arith.constant 0 : index
    %c0_1 = arith.constant 0 : index
    %0 = vector.load %arg1[%c0, %c0_0, %c0_1] : memref<1x4x256xf32, #tpu.memory_space<vmem>>, vector<1x4x256xf32>
    %1 = vector.shape_cast %0 : vector<1x4x256xf32> to vector<4x256xf32>
    %c0_2 = arith.constant 0 : index
    %c0_3 = arith.constant 0 : index
    %2 = vector.load %arg2[%c0_2, %c0_3] : memref<72x4xf32, #tpu.memory_space<vmem>>, vector<72x4xf32>
    %cst = arith.constant dense<0.000000e+00> : vector<72x256xf32>
    %3 = tpu.matmul %2, %1, %cst {dimension_numbers = #tpu.dot_dimension_numbers<[1], [0], [0], [1], [0, 0, 1, 1], [], []>} : vector<72x4xf32>, vector<4x256xf32>, vector<72x256xf32> -> vector<72x256xf32>
    %4 = vector.extract_strided_slice %3 {offsets = [32, 0], sizes = [8, 256], strides = [1, 1]} : vector<72x256xf32> to vector<8x256xf32>
    %5 = vector.extract_strided_slice %3 {offsets = [0, 0], sizes = [8, 256], strides = [1, 1]} : vector<72x256xf32> to vector<8x256xf32>
    %c17_i32 = arith.constant 17 : i32
    %6 = tpu.dynamic_rotate %5 by %c17_i32 dim 1 : vector<8x256xf32>, i32 -> vector<8x256xf32>
    %c0_4 = arith.constant 0 : index
    %c0_5 = arith.constant 0 : index
    %7 = vector.load %arg4[%c0_4, %c0_5] : memref<9x256xf32, #tpu.memory_space<vmem>>, vector<1x256xf32>
    %8 = vector.broadcast %7 : vector<1x256xf32> to vector<8x256xf32>
    %9 = arith.mulf %6, %8 : vector<8x256xf32>
    %10 = arith.addf %4, %9 : vector<8x256xf32>
    %11 = vector.extract_strided_slice %3 {offsets = [8, 0], sizes = [8, 256], strides = [1, 1]} : vector<72x256xf32> to vector<8x256xf32>
    %c16_i32 = arith.constant 16 : i32
    %12 = tpu.dynamic_rotate %11 by %c16_i32 dim 1 : vector<8x256xf32>, i32 -> vector<8x256xf32>
    %c1 = arith.constant 1 : index
    %c0_6 = arith.constant 0 : index
    %13 = vector.load %arg4[%c1, %c0_6] : memref<9x256xf32, #tpu.memory_space<vmem>>, vector<1x256xf32>
    %14 = vector.broadcast %13 : vector<1x256xf32> to vector<8x256xf32>
    %15 = arith.mulf %12, %14 : vector<8x256xf32>
    %16 = arith.addf %10, %15 : vector<8x256xf32>
    %17 = vector.extract_strided_slice %3 {offsets = [16, 0], sizes = [8, 256], strides = [1, 1]} : vector<72x256xf32> to vector<8x256xf32>
    %c15_i32 = arith.constant 15 : i32
    %18 = tpu.dynamic_rotate %17 by %c15_i32 dim 1 : vector<8x256xf32>, i32 -> vector<8x256xf32>
    %c2 = arith.constant 2 : index
    %c0_7 = arith.constant 0 : index
    %19 = vector.load %arg4[%c2, %c0_7] : memref<9x256xf32, #tpu.memory_space<vmem>>, vector<1x256xf32>
    %20 = vector.broadcast %19 : vector<1x256xf32> to vector<8x256xf32>
    %21 = arith.mulf %18, %20 : vector<8x256xf32>
    %22 = arith.addf %16, %21 : vector<8x256xf32>
    %23 = vector.extract_strided_slice %3 {offsets = [24, 0], sizes = [8, 256], strides = [1, 1]} : vector<72x256xf32> to vector<8x256xf32>
    %c1_i32 = arith.constant 1 : i32
    %24 = tpu.dynamic_rotate %23 by %c1_i32 dim 1 : vector<8x256xf32>, i32 -> vector<8x256xf32>
    %c3 = arith.constant 3 : index
    %c0_8 = arith.constant 0 : index
    %25 = vector.load %arg4[%c3, %c0_8] : memref<9x256xf32, #tpu.memory_space<vmem>>, vector<1x256xf32>
    %26 = vector.broadcast %25 : vector<1x256xf32> to vector<8x256xf32>
    %27 = arith.mulf %24, %26 : vector<8x256xf32>
    %28 = arith.addf %22, %27 : vector<8x256xf32>
    %29 = vector.extract_strided_slice %3 {offsets = [40, 0], sizes = [8, 256], strides = [1, 1]} : vector<72x256xf32> to vector<8x256xf32>
    %c255_i32 = arith.constant 255 : i32
    %30 = tpu.dynamic_rotate %29 by %c255_i32 dim 1 : vector<8x256xf32>, i32 -> vector<8x256xf32>
    %c5 = arith.constant 5 : index
    %c0_9 = arith.constant 0 : index
    %31 = vector.load %arg4[%c5, %c0_9] : memref<9x256xf32, #tpu.memory_space<vmem>>, vector<1x256xf32>
    %32 = vector.broadcast %31 : vector<1x256xf32> to vector<8x256xf32>
    %33 = arith.mulf %30, %32 : vector<8x256xf32>
    %34 = arith.addf %28, %33 : vector<8x256xf32>
    %35 = vector.extract_strided_slice %3 {offsets = [48, 0], sizes = [8, 256], strides = [1, 1]} : vector<72x256xf32> to vector<8x256xf32>
    %c241_i32 = arith.constant 241 : i32
    %36 = tpu.dynamic_rotate %35 by %c241_i32 dim 1 : vector<8x256xf32>, i32 -> vector<8x256xf32>
    %c6 = arith.constant 6 : index
    %c0_10 = arith.constant 0 : index
    %37 = vector.load %arg4[%c6, %c0_10] : memref<9x256xf32, #tpu.memory_space<vmem>>, vector<1x256xf32>
    %38 = vector.broadcast %37 : vector<1x256xf32> to vector<8x256xf32>
    %39 = arith.mulf %36, %38 : vector<8x256xf32>
    %40 = arith.addf %34, %39 : vector<8x256xf32>
    %41 = vector.extract_strided_slice %3 {offsets = [56, 0], sizes = [8, 256], strides = [1, 1]} : vector<72x256xf32> to vector<8x256xf32>
    %c240_i32 = arith.constant 240 : i32
    %42 = tpu.dynamic_rotate %41 by %c240_i32 dim 1 : vector<8x256xf32>, i32 -> vector<8x256xf32>
    %c7 = arith.constant 7 : index
    %c0_11 = arith.constant 0 : index
    %43 = vector.load %arg4[%c7, %c0_11] : memref<9x256xf32, #tpu.memory_space<vmem>>, vector<1x256xf32>
    %44 = vector.broadcast %43 : vector<1x256xf32> to vector<8x256xf32>
    %45 = arith.mulf %42, %44 : vector<8x256xf32>
    %46 = arith.addf %40, %45 : vector<8x256xf32>
    %47 = vector.extract_strided_slice %3 {offsets = [64, 0], sizes = [8, 256], strides = [1, 1]} : vector<72x256xf32> to vector<8x256xf32>
    %c239_i32 = arith.constant 239 : i32
    %48 = tpu.dynamic_rotate %47 by %c239_i32 dim 1 : vector<8x256xf32>, i32 -> vector<8x256xf32>
    %c8 = arith.constant 8 : index
    %c0_12 = arith.constant 0 : index
    %49 = vector.load %arg4[%c8, %c0_12] : memref<9x256xf32, #tpu.memory_space<vmem>>, vector<1x256xf32>
    %50 = vector.broadcast %49 : vector<1x256xf32> to vector<8x256xf32>
    %51 = arith.mulf %48, %50 : vector<8x256xf32>
    %52 = arith.addf %46, %51 : vector<8x256xf32>
    %53 = vector.extract_strided_slice %52 {offsets = [0, 0], sizes = [4, 256], strides = [1, 1]} : vector<8x256xf32> to vector<4x256xf32>
    %c0_13 = arith.constant 0 : index
    %c0_14 = arith.constant 0 : index
    %54 = vector.load %arg3[%c0_13, %c0_14] : memref<4x1xf32, #tpu.memory_space<vmem>>, vector<4x1xf32>
    %55 = vector.broadcast %54 : vector<4x1xf32> to vector<4x256xf32>
    %56 = arith.addf %53, %55 : vector<4x256xf32>
    %57 = arith.addf %56, %1 : vector<4x256xf32>
    %58 = arith.mulf %57, %57 : vector<4x256xf32>
    %cst_15 = arith.constant dense<0.000000e+00> : vector<256xf32>
    %59 = vector.multi_reduction <add>, %58, %cst_15 [0] : vector<4x256xf32> to vector<256xf32>
    %60 = vector.shape_cast %59 : vector<256xf32> to vector<1x256xf32>
    %cst_16 = arith.constant 1.000000e-24 : f32
    %61 = vector.broadcast %cst_16 : f32 to vector<1x256xf32>
    %62 = arith.maximumf %60, %61 : vector<1x256xf32>
    %63 = math.rsqrt %62 : vector<1x256xf32>
    %64 = vector.broadcast %63 : vector<1x256xf32> to vector<4x256xf32>
    %65 = arith.mulf %57, %64 : vector<4x256xf32>
    %c0_17 = arith.constant 0 : index
    %c0_18 = arith.constant 0 : index
    %c0_19 = arith.constant 0 : index
    %66 = vector.load %arg5[%c0_17, %c0_18, %c0_19] : memref<1x4x256xf32, #tpu.memory_space<vmem>>, vector<1x4x256xf32>
    %67 = vector.shape_cast %66 : vector<1x4x256xf32> to vector<4x256xf32>
    %68 = vector.shape_cast %65 : vector<4x256xf32> to vector<1x4x256xf32>
    tpu.vector_store %arg5[%c0_17, %c0_18, %c0_19], %68 {strides = array<i32>} : memref<1x4x256xf32, #tpu.memory_space<vmem>>, vector<1x4x256xf32>,
    return
  }
  func.func @transform_0(%arg0: i32) -> (i32, i32, i32) {
    %c0_i32 = arith.constant 0 : i32
    %c0_i32_0 = arith.constant 0 : i32
    %c0_i32_1 = arith.constant 0 : i32
    return %arg0, %c0_i32, %c0_i32_0 : i32, i32, i32
  }
  func.func @transform_1(%arg0: i32) -> (i32, i32) {
    %c0_i32 = arith.constant 0 : i32
    %c0_i32_0 = arith.constant 0 : i32
    %c0_i32_1 = arith.constant 0 : i32
    return %c0_i32, %c0_i32_0 : i32, i32
  }
  func.func @transform_2(%arg0: i32) -> (i32, i32) {
    %c0_i32 = arith.constant 0 : i32
    %c0_i32_0 = arith.constant 0 : i32
    %c0_i32_1 = arith.constant 0 : i32
    return %c0_i32, %c0_i32_0 : i32, i32
  }
  func.func @transform_3(%arg0: i32) -> (i32, i32) {
    %c0_i32 = arith.constant 0 : i32
    %c0_i32_0 = arith.constant 0 : i32
    %c0_i32_1 = arith.constant 0 : i32
    return %c0_i32, %c0_i32_0 : i32, i32
  }
  func.func @transform_4(%arg0: i32) -> (i32, i32, i32) {
    %c0_i32 = arith.constant 0 : i32
    %c0_i32_0 = arith.constant 0 : i32
    %c0_i32_1 = arith.constant 0 : i32
    return %arg0, %c0_i32, %c0_i32_0 : i32, i32, i32
  }
}

</mosaic_0001>

<llo_original>
// kernel: tpu_custom_call.1
$region0: #{tpu_custom_call.1}
  #allocation0 [shape = 'u32[]', space=smem, size = 0x4, offset = 0x4, fixed_abs, tag = 'smem constant byte address 0x4 - core index']
  #allocation1 [shape = 'u32[144,128]{1,0:T(1,128)}', space=vmem, size = 0x12000, scoped, tag = 'internal scratch']
  %s0 = inlined_call_operand.vmem [shape: f32[2,4,256], index: 0, kind: input, shape index: {}]
  %s1 = inlined_call_operand.vmem [shape: f32[72,4], index: 1, kind: input, shape index: {}]
  %s2 = inlined_call_operand.vmem [shape: f32[4,1], index: 2, kind: input, shape index: {}]
  %s3 = inlined_call_operand.vmem [shape: f32[9,256], index: 3, kind: input, shape index: {}]
  %s4 = inlined_call_operand.hbm [shape: f32[2,4,256], index: 4, kind: output, shape index: {}]
  %s5 = sld [smem:[#allocation0]]
  $region49: #{tpu_custom_call.1} parent=0
    _
  %s7 = ssub.s32 1, %s5
  %s8 = scalar_select 0, %s7, %s5
  $region1: #{tpu_custom_call.1} parent=0
    #allocation2 [shape = 'u8[8192]{0}', space=vmem, size = 0x2000, scoped, tag = 'output window, operand 0']
    #allocation3 [shape = 's32[2]{0}', space=sflag, size = 0x8, scoped, tag = 'scoped memory for tpu_custom_call.1']
    %9 = vsyncpa [#allocation3], 0
    %s10 = scalar_lea.sflag [#allocation3], 1
    %11 = vsyncpa %s10, 0
    loop: start=0, step=1, limit=4
    $region2: #{tpu_custom_call.1} parent=1 // loop_pre_header
      _
    $region3: #{tpu_custom_call.1} parent=1 // loop_header
      %s13 = sphi 0, %s17
      %p14 = scmp.ge.s32.totalorder %s13, 4
      %s23 = sphi 0, %s25
      %s26 = sphi 0, %s23
      %s27 = sphi 0, %s26
      %s43 = sphi 0, %s27
      %s47 = sphi 0, %s47
      %s49 = sphi 0, %s47
      %s50 = sphi 0, %s49
      %s64 = sphi 0, %s50
      %s68 = sphi 0, %s68
      %s70 = sphi 0, %s68
      %s71 = sphi 0, %s70
      %s85 = sphi 0, %s71
      %s89 = sphi 0, %s89
      %s91 = sphi 0, %s89
      %s92 = sphi 0, %s91
      %s106 = sphi 0, %s92
      %s112 = sphi 0, %s114
      %s115 = sphi 0, %s112
      %s116 = sphi 0, %s115
      %s132 = sphi 0, %s116
    $region4: #{tpu_custom_call.1} parent=1 // loop_header_branch
      %16 = sbr.rel (%p14) target = $region8
    $region5: #{tpu_custom_call.1} parent=1 // loop_body
      %s18 = ssub.s32 %s13, 1
      %s19 = ssub.s32 %s13, 2
      %s20 = sadd.s32 %s13, 1
      %s21 = ssub.s32 %s13, %s20
      %p22 = scmp.eq.s32.totalorder %s21, 0
      %s24 = sadd.s32 %s23, 1
      %s25 = scalar_select %p22, %s23, %s24
      %p28 = pneg %p22
      %p29 = scmp.eq.s32.totalorder %s13, 1
      %p30 = por %p28, %p29
      %p31 = scmp.ne.s32.totalorder %s23, %s26
      %p32 = scmp.eq.s32.totalorder %s13, 0
      %p33 = por %p31, %p32
      %p34 = scmp.ne.s32.totalorder %s23, %s26
      %p35 = scmp.eq.s32.totalorder %s18, 1
      %p36 = por %p34, %p35
      %p37 = scmp.ne.s32.totalorder %s26, %s27
      %p38 = scmp.eq.s32.totalorder %s18, 0
      %p39 = por %p37, %p38
      %p40 = scmp.ne.s32.totalorder %s26, %s27
      %p41 = scmp.eq.s32.totalorder %s19, 1
      %p42 = por %p40, %p41
      %p44 = scmp.ne.s32.totalorder %s27, %s43
      %p45 = scmp.eq.s32.totalorder %s19, 0
      %p46 = por %p44, %p45
      %s48 = sadd.s32 %s47, 1
      %p51 = scmp.eq.s32.totalorder %s13, 1
      %p52 = scmp.ne.s32.totalorder %s47, %s49
      %p53 = scmp.eq.s32.totalorder %s13, 0
      %p54 = por %p52, %p53
      %p55 = scmp.ne.s32.totalorder %s47, %s49
      %p56 = scmp.eq.s32.totalorder %s18, 1
      %p57 = por %p55, %p56
      %p58 = scmp.ne.s32.totalorder %s49, %s50
      %p59 = scmp.eq.s32.totalorder %s18, 0
      %p60 = por %p58, %p59
      %p61 = scmp.ne.s32.totalorder %s49, %s50
      %p62 = scmp.eq.s32.totalorder %s19, 1
      %p63 = por %p61, %p62
      %p65 = scmp.ne.s32.totalorder %s50, %s64
      %p66 = scmp.eq.s32.totalorder %s19, 0
      %p67 = por %p65, %p66
      %s69 = sadd.s32 %s68, 1
      %p72 = scmp.eq.s32.totalorder %s13, 1
      %p73 = scmp.ne.s32.totalorder %s68, %s70
      %p74 = scmp.eq.s32.totalorder %s13, 0
      %p75 = por %p73, %p74
      %p76 = scmp.ne.s32.totalorder %s68, %s70
      %p77 = scmp.eq.s32.totalorder %s18, 1
      %p78 = por %p76, %p77
      %p79 = scmp.ne.s32.totalorder %s70, %s71
      %p80 = scmp.eq.s32.totalorder %s18, 0
      %p81 = por %p79, %p80
      %p82 = scmp.ne.s32.totalorder %s70, %s71
      %p83 = scmp.eq.s32.totalorder %s19, 1
      %p84 = por %p82, %p83
      %p86 = scmp.ne.s32.totalorder %s71, %s85
      %p87 = scmp.eq.s32.totalorder %s19, 0
      %p88 = por %p86, %p87
      %s90 = sadd.s32 %s89, 1
      %p93 = scmp.eq.s32.totalorder %s13, 1
      %p94 = scmp.ne.s32.totalorder %s89, %s91
      %p95 = scmp.eq.s32.totalorder %s13, 0
      %p96 = por %p94, %p95
      %p97 = scmp.ne.s32.totalorder %s89, %s91
      %p98 = scmp.eq.s32.totalorder %s18, 1
      %p99 = por %p97, %p98
      %p100 = scmp.ne.s32.totalorder %s91, %s92
      %p101 = scmp.eq.s32.totalorder %s18, 0
      %p102 = por %p100, %p101
      %p103 = scmp.ne.s32.totalorder %s91, %s92
      %p104 = scmp.eq.s32.totalorder %s19, 1
      %p105 = por %p103, %p104
      %p107 = scmp.ne.s32.totalorder %s92, %s106
      %p108 = scmp.eq.s32.totalorder %s19, 0
      %p109 = por %p107, %p108
      %s110 = ssub.s32 %s13, %s20
      %p111 = scmp.eq.s32.totalorder %s110, 0
      %s113 = sadd.s32 %s112, 1
      %s114 = scalar_select %p111, %s112, %s113
      %p117 = pneg %p111
      %p118 = scmp.eq.s32.totalorder %s13, 1
      %p119 = por %p117, %p118
      %p120 = scmp.ne.s32.totalorder %s112, %s115
      %p121 = scmp.eq.s32.totalorder %s13, 0
      %p122 = por %p120, %p121
      %p123 = scmp.ne.s32.totalorder %s112, %s115
      %p124 = scmp.eq.s32.totalorder %s18, 1
      %p125 = por %p123, %p124
      %p126 = scmp.ne.s32.totalorder %s115, %s116
      %p127 = scmp.eq.s32.totalorder %s18, 0
      %p128 = por %p126, %p127
      %p129 = scmp.ne.s32.totalorder %s115, %s116
      %p130 = scmp.eq.s32.totalorder %s19, 1
      %p131 = por %p129, %p130
      %p133 = scmp.ne.s32.totalorder %s116, %s132
      %p134 = scmp.eq.s32.totalorder %s19, 0
      %p135 = por %p133, %p134
      %p136 = scmp.le.s32.totalorder 1, %s13
      %p137 = scmp.lt.s32.totalorder %s13, 3
      %p138 = pnand %p136, %p137
      %p139 = pneg %p138
      // Predicated region
      $region9: #{tpu_custom_call.1} parent=5 // pred_check
        _
      $region10: #{tpu_custom_call.1} parent=5 // pred_check_branch
        %141 = sbr.rel (%p138) target = $region12
      $region11: #{tpu_custom_call.1} parent=5 // pred_region
        %s142 = ssub.s32 %s13, 1
        // Predicated region
        $region13: #{tpu_custom_call.1} parent=11 // pred_check
          %p143 = pneg %p60
        $region14: #{tpu_custom_call.1} parent=11 // pred_check_branch
          %145 = sbr.rel (%p143) target = $region16
        $region15: #{tpu_custom_call.1} parent=11 // pred_region
          _
        $region16: #{tpu_custom_call.1} parent=11 // pred_fallthru
          _
        // Predicated region
        $region17: #{tpu_custom_call.1} parent=11 // pred_check
          %p146 = pneg %p81
        $region18: #{tpu_custom_call.1} parent=11 // pred_check_branch
          %148 = sbr.rel (%p146) target = $region20
        $region19: #{tpu_custom_call.1} parent=11 // pred_region
          _
        $region20: #{tpu_custom_call.1} parent=11 // pred_fallthru
          _
        // Predicated region
        $region21: #{tpu_custom_call.1} parent=11 // pred_check
          %p149 = pneg %p102
        $region22: #{tpu_custom_call.1} parent=11 // pred_check_branch
          %151 = sbr.rel (%p149) target = $region24
        $region23: #{tpu_custom_call.1} parent=11 // pred_region
          _
        $region24: #{tpu_custom_call.1} parent=11 // pred_fallthru
          _
      $region12: #{tpu_custom_call.1} parent=5 // pred_fallthru
        _
      %p152 = scmp.lt.s32.totalorder %s13, 2
      // Predicated region
      $region25: #{tpu_custom_call.1} parent=5 // pred_check
        %p153 = pneg %p152
      $region26: #{tpu_custom_call.1} parent=5 // pred_check_branch
        %155 = sbr.rel (%p153) target = $region28
      $region27: #{tpu_custom_call.1} parent=5 // pred_region
        // Predicated region
        $region29: #{tpu_custom_call.1} parent=27 // pred_check
          %p156 = pneg %p33
        $region30: #{tpu_custom_call.1} parent=27 // pred_check_branch
          %158 = sbr.rel (%p156) target = $region32
        $region31: #{tpu_custom_call.1} parent=27 // pred_region
          %p159 = scmp.lt.s32.totalorder %s13, 1
          %s160 = scalar_select %p159, %s13, 1
          %s161 = smul.addr %s160, 2
          %s162 = smul.addr %s161, 4
          %s163 = scalar_lea.vmem %s0, %s162
        $region32: #{tpu_custom_call.1} parent=27 // pred_fallthru
          _
      $region28: #{tpu_custom_call.1} parent=5 // pred_fallthru
        _
      %p164 = scmp.le.s32.totalorder 1, %s13
      %p165 = scmp.lt.s32.totalorder %s13, 3
      %p166 = pnand %p164, %p165
      %p167 = pneg %p166
      // Predicated region
      $region33: #{tpu_custom_call.1} parent=5 // pred_check
        _
      $region34: #{tpu_custom_call.1} parent=5 // pred_check_branch
        %169 = sbr.rel (%p166) target = $region36
      $region35: #{tpu_custom_call.1} parent=5 // pred_region
        %s170 = ssub.s32 %s13, 1
        %p171 = scmp.lt.s32.totalorder %s18, 1
        %s172 = scalar_select %p171, %s18, 1
        %s173 = smul.addr %s172, 2
        %s174 = smul.addr %s173, 4
        %s175 = scalar_lea.vmem %s0, %s174
        %p176 = pneg %p39
        %p177 = pneg %p36
        %p178 = pneg %p60
        %p179 = pneg %p57
        %p180 = pneg %p81
        %p181 = pneg %p78
        %p182 = pneg %p102
        %p183 = pneg %p99
        %p184 = pneg %p128
        %p185 = pneg %p125
        %s186 = sand.u32 %s115, 1
        %s187 = scalar_lea.sflag [#allocation3], %s186
        %s188 = sand.u32 %s115, 1
        %s189 = smul.addr %s188, 8
        %s190 = scalar_lea.vmem [#allocation2], %s189
        %p191 = scmp.lt.s32.totalorder %s18, 1
        %s192 = scalar_select %p191, %s18, 1
        %s193 = smul.addr %s192, 2
        %s194 = smul.addr %s193, 4
        %s195 = scalar_lea.vmem %s0, %s194
        %v196 = vld [vmem:[%s195] sm:$0xff]
        %v197 = vld [vmem:[%s1] sm:$0xff]
        %v198 = vld [vmem:[%s1 + $0x8] sm:$0xff]
        %v199 = vld [vmem:[%s1 + $0x10] sm:$0xff]
        %v200 = vld [vmem:[%s1 + $0x18] sm:$0xff]
        %v201 = vld [vmem:[%s1 + $0x20] sm:$0xff]
        %v202 = vld [vmem:[%s1 + $0x28] sm:$0xff]
        %v203 = vld [vmem:[%s1 + $0x30] sm:$0xff]
        %v204 = vld [vmem:[%s1 + $0x38] sm:$0xff]
        %v205 = vld [vmem:[%s1 + $0x40] sm:$0xff]
        %v207 = vcombine.high %v196, %v196
        %vm208 = vcmask 31744
        %v210 = vsel %vm208, %v197, 0
        %v213 = vsel %vm208, %v198, 0
        %v216 = vsel %vm208, %v199, 0
        %v219 = vsel %vm208, %v200, 0
        %v222 = vsel %vm208, %v201, 0
        %v225 = vsel %vm208, %v202, 0
        %v228 = vsel %vm208, %v203, 0
        %v231 = vsel %vm208, %v204, 0
        %v234 = vsel %vm208, %v205, 0
        %vm236 = vcmask 1043456
        %v237 = vsel %vm236, %v196, 0
        %v239 = vsel %vm236, %v207, 0
        %241 = vmatprep.subr.mxu0 %v239
        %242 = vmatpush1.msra.mxu0 %v237
        %243 = vmatprep.subr.mxu0 0.0
        %244 = vmatpush1.msra.mxu0 0.0
        %245 = vmatprep.subr.mxu0 0.0
        %246 = vmatpush1.msra.mxu0 0.0
        %247 = vmatprep.subr.mxu0 0.0
        %248 = vmatpush1.msra.mxu0 0.0
        %249 = vmatprep.subr.mxu0 0.0
        %250 = vmatpush1.msra.mxu0 0.0
        %251 = vmatprep.subr.mxu0 0.0
        %252 = vmatpush1.msra.mxu0 0.0
        %253 = vmatprep.subr.mxu0 0.0
        %254 = vmatpush1.msra.mxu0 0.0
        %255 = vmatprep.subr.mxu0 0.0
        %256 = vmatpush1.msra.mxu0 0.0
        %257 = vmatprep.subr.mxu0 0.0
        %258 = vmatpush1.msra.mxu0 0.0
        %259 = vmatprep.subr.mxu0 0.0
        %260 = vmatpush1.msra.mxu0 0.0
        %261 = vmatprep.subr.mxu0 0.0
        %262 = vmatpush1.msra.mxu0 0.0
        %263 = vmatprep.subr.mxu0 0.0
        %264 = vmatpush1.msra.mxu0 0.0
        %265 = vmatprep.subr.mxu0 0.0
        %266 = vmatpush1.msra.mxu0 0.0
        %267 = vmatprep.subr.mxu0 0.0
        %268 = vmatpush1.msra.mxu0 0.0
        %269 = vmatprep.subr.mxu0 0.0
        %270 = vmatpush1.msra.mxu0 0.0
        %271 = vmatprep.subr.mxu0 0.0
        %272 = vmatpush1.msra.mxu0 0.0
        %273 = vmatprep.subr.mxu0 0.0
        %274 = vmatpush1.msra.mxu0 0.0
        %275 = vmatprep.subr.mxu0 0.0
        %276 = vmatpush1.msra.mxu0 0.0
        %277 = vmatprep.subr.mxu0 0.0
        %278 = vmatpush1.msra.mxu0 0.0
        %279 = vmatprep.subr.mxu0 0.0
        %280 = vmatpush1.msra.mxu0 0.0
        %281 = vmatprep.subr.mxu0 0.0
        %282 = vmatpush1.msra.mxu0 0.0
        %283 = vmatprep.subr.mxu0 0.0
        %284 = vmatpush1.msra.mxu0 0.0
        %285 = vmatprep.subr.mxu0 0.0
        %286 = vmatpush1.msra.mxu0 0.0
        %287 = vmatprep.subr.mxu0 0.0
        %288 = vmatpush1.msra.mxu0 0.0
        %289 = vmatprep.subr.mxu0 0.0
        %290 = vmatpush1.msra.mxu0 0.0
        %291 = vmatprep.subr.mxu0 0.0
        %292 = vmatpush1.msra.mxu0 0.0
        %293 = vmatprep.subr.mxu0 0.0
        %294 = vmatpush1.msra.mxu0 0.0
        %295 = vmatprep.subr.mxu0 0.0
        %296 = vmatpush1.msra.mxu0 0.0
        %297 = vmatprep.subr.mxu0 0.0
        %298 = vmatpush1.msra.mxu0 0.0
        %299 = vmatprep.subr.mxu0 0.0
        %300 = vmatpush1.msra.mxu0 0.0
        %301 = vmatprep.subr.mxu0 0.0
        %302 = vmatpush1.msra.mxu0 0.0
        %303 = vmatprep.subr.mxu0 0.0
        %304 = vmatpush1.msra.mxu0 0.0
        %305 = vmatprep.mubr.f32.mxu0 0.0
        %306 = vmatmul.mubr.f32.gmra.mrb[0].mxu0 %v210
        %v307 = vpop.f32.mrb[0].mxu0
        %v308 = vadd.f32 0.0, %v307
        %v309 = vpop.f32.mrb[0].mxu0
        %v310 = vadd.f32 0.0, %v309
        %311 = vmatprep.mubr.f32.mxu0 0.0
        %312 = vmatmul.mubr.f32.gmra.mrb[0].mxu0 %v213
        %v313 = vpop.f32.mrb[0].mxu0
        %v314 = vadd.f32 0.0, %v313
        %v315 = vpop.f32.mrb[0].mxu0
        %v316 = vadd.f32 0.0, %v315
        %317 = vmatprep.mubr.f32.mxu0 0.0
        %318 = vmatmul.mubr.f32.gmra.mrb[0].mxu0 %v216
        %v319 = vpop.f32.mrb[0].mxu0
        %v320 = vadd.f32 0.0, %v319
        %v321 = vpop.f32.mrb[0].mxu0
        %v322 = vadd.f32 0.0, %v321
        %323 = vmatprep.mubr.f32.mxu0 0.0
        %324 = vmatmul.mubr.f32.gmra.mrb[0].mxu0 %v219
        %v325 = vpop.f32.mrb[0].mxu0
        %v326 = vadd.f32 0.0, %v325
        %v327 = vpop.f32.mrb[0].mxu0
        %v328 = vadd.f32 0.0, %v327
        %329 = vmatprep.mubr.f32.mxu0 0.0
        %330 = vmatmul.mubr.f32.gmra.mrb[0].mxu0 %v222
        %v331 = vpop.f32.mrb[0].mxu0
        %v332 = vadd.f32 0.0, %v331
        %v333 = vpop.f32.mrb[0].mxu0
        %v334 = vadd.f32 0.0, %v333
        %335 = vmatprep.mubr.f32.mxu0 0.0
        %336 = vmatmul.mubr.f32.gmra.mrb[0].mxu0 %v225
        %v337 = vpop.f32.mrb[0].mxu0
        %v338 = vadd.f32 0.0, %v337
        %v339 = vpop.f32.mrb[0].mxu0
        %v340 = vadd.f32 0.0, %v339
        %341 = vmatprep.mubr.f32.mxu0 0.0
        %342 = vmatmul.mubr.f32.gmra.mrb[0].mxu0 %v228
        %v343 = vpop.f32.mrb[0].mxu0
        %v344 = vadd.f32 0.0, %v343
        %v345 = vpop.f32.mrb[0].mxu0
        %v346 = vadd.f32 0.0, %v345
        %347 = vmatprep.mubr.f32.mxu0 0.0
        %348 = vmatmul.mubr.f32.gmra.mrb[0].mxu0 %v231
        %v349 = vpop.f32.mrb[0].mxu0
        %v350 = vadd.f32 0.0, %v349
        %v351 = vpop.f32.mrb[0].mxu0
        %v352 = vadd.f32 0.0, %v351
        %353 = vmatprep.mubr.f32.mxu0 0.0
        %354 = vmatmul.mubr.f32.gmra.mrb[0].mxu0 %v234
        %v355 = vpop.f32.mrb[0].mxu0
        %v356 = vadd.f32 0.0, %v355
        %v357 = vpop.f32.mrb[0].mxu0
        %v358 = vadd.f32 0.0, %v357
        %359 = vdwg.mxu0
        %360 = vrot.lane.b32.xlu0 %v308, 17
        %v361 = vpop.permute.xlu0 %360
        %362 = vrot.lane.b32.xlu0 %v310, 17
        %v363 = vpop.permute.xlu0 %362
        %v364 = vlaneseq
        %v365 = vand.u32 %v364, 127
        %vm366 = vcmp.lt.s32.totalorder %v365, 17
        %v367 = vsel %vm366, %v361, %v363
        %v368 = vsel %vm366, %v363, %v361
        %v369 = vld [vmem:[%s3] ss:$8 sm:$0x3]
        %v371 = vlaneseq
        %v372 = vshrl.u32 %v371, 7
        %v373 = vsub.s32 0, %v372
        %v374 = vrot.slane %v369, %v373
        %v375 = vlaneseq
        %v376 = vshrl.u32 %v375, 7
        %v377 = vsub.s32 1, %v376
        %v378 = vrot.slane %v369, %v377
        %v381 = vmul.f32 %v368, %v374
        %v382 = vmul.f32 %v367, %v378
        %v383 = vadd.f32 %v332, %v381
        %v384 = vadd.f32 %v334, %v382
        %385 = vrot.lane.b32.xlu0 %v314, 16
        %v386 = vpop.permute.xlu0 %385
        %387 = vrot.lane.b32.xlu0 %v316, 16
        %v388 = vpop.permute.xlu0 %387
        %vm389 = vcmp.lt.s32.totalorder %v365, 16
        %v390 = vsel %vm389, %v386, %v388
        %v391 = vsel %vm389, %v388, %v386
        %s392 = scalar_lea.vmem %s3, 1
        %v393 = vld [vmem:[%s392] ss:$8 sm:$0x3]
        %v395 = vlaneseq
        %v396 = vshrl.u32 %v395, 7
        %v397 = vsub.s32 0, %v396
        %v398 = vrot.slane %v393, %v397
        %v399 = vlaneseq
        %v400 = vshrl.u32 %v399, 7
        %v401 = vsub.s32 1, %v400
        %v402 = vrot.slane %v393, %v401
        %v405 = vmul.f32 %v391, %v398
        %v406 = vmul.f32 %v390, %v402
        %v407 = vadd.f32 %v383, %v405
        %v408 = vadd.f32 %v384, %v406
        %409 = vrot.lane.b32.xlu0 %v320, 15
        %v410 = vpop.permute.xlu0 %409
        %411 = vrot.lane.b32.xlu0 %v322, 15
        %v412 = vpop.permute.xlu0 %411
        %vm413 = vcmp.lt.s32.totalorder %v365, 15
        %v414 = vsel %vm413, %v410, %v412
        %v415 = vsel %vm413, %v412, %v410
        %s416 = scalar_lea.vmem %s3, 2
        %v417 = vld [vmem:[%s416] ss:$8 sm:$0x3]
        %v419 = vlaneseq
        %v420 = vshrl.u32 %v419, 7
        %v421 = vsub.s32 0, %v420
        %v422 = vrot.slane %v417, %v421
        %v423 = vlaneseq
        %v424 = vshrl.u32 %v423, 7
        %v425 = vsub.s32 1, %v424
        %v426 = vrot.slane %v417, %v425
        %v429 = vmul.f32 %v415, %v422
        %v430 = vmul.f32 %v414, %v426
        %v431 = vadd.f32 %v407, %v429
        %v432 = vadd.f32 %v408, %v430
        %433 = vrot.lane.b32.xlu0 %v326, 1
        %v434 = vpop.permute.xlu0 %433
        %435 = vrot.lane.b32.xlu0 %v328, 1
        %v436 = vpop.permute.xlu0 %435
        %vm437 = vcmp.lt.s32.totalorder %v365, 1
        %v438 = vsel %vm437, %v434, %v436
        %v439 = vsel %vm437, %v436, %v434
        %s440 = scalar_lea.vmem %s3, 3
        %v441 = vld [vmem:[%s440] ss:$8 sm:$0x3]
        %v443 = vlaneseq
        %v444 = vshrl.u32 %v443, 7
        %v445 = vsub.s32 0, %v444
        %v446 = vrot.slane %v441, %v445
        %v447 = vlaneseq
        %v448 = vshrl.u32 %v447, 7
        %v449 = vsub.s32 1, %v448
        %v450 = vrot.slane %v441, %v449
        %v453 = vmul.f32 %v439, %v446
        %v454 = vmul.f32 %v438, %v450
        %v455 = vadd.f32 %v431, %v453
        %v456 = vadd.f32 %v432, %v454
        %457 = vrot.lane.b32.xlu0 %v338, 127
        %v458 = vpop.permute.xlu0 %457
        %459 = vrot.lane.b32.xlu0 %v340, 127
        %v460 = vpop.permute.xlu0 %459
        %vm461 = vcmp.lt.s32.totalorder %v365, 127
        %v462 = vsel %vm461, %v458, %v460
        %v463 = vsel %vm461, %v460, %v458
        %s464 = scalar_lea.vmem %s3, 5
        %v465 = vld [vmem:[%s464] ss:$8 sm:$0x3]
        %v467 = vlaneseq
        %v468 = vshrl.u32 %v467, 7
        %v469 = vsub.s32 0, %v468
        %v470 = vrot.slane %v465, %v469
        %v471 = vlaneseq
        %v472 = vshrl.u32 %v471, 7
        %v473 = vsub.s32 1, %v472
        %v474 = vrot.slane %v465, %v473
        %v477 = vmul.f32 %v462, %v470
        %v478 = vmul.f32 %v463, %v474
        %v479 = vadd.f32 %v455, %v477
        %v480 = vadd.f32 %v456, %v478
        %481 = vrot.lane.b32.xlu0 %v344, 113
        %v482 = vpop.permute.xlu0 %481
        %483 = vrot.lane.b32.xlu0 %v346, 113
        %v484 = vpop.permute.xlu0 %483
        %vm485 = vcmp.lt.s32.totalorder %v365, 113
        %v486 = vsel %vm485, %v482, %v484
        %v487 = vsel %vm485, %v484, %v482
        %s488 = scalar_lea.vmem %s3, 6
        %v489 = vld [vmem:[%s488] ss:$8 sm:$0x3]
        %v491 = vlaneseq
        %v492 = vshrl.u32 %v491, 7
        %v493 = vsub.s32 0, %v492
        %v494 = vrot.slane %v489, %v493
        %v495 = vlaneseq
        %v496 = vshrl.u32 %v495, 7
        %v497 = vsub.s32 1, %v496
        %v498 = vrot.slane %v489, %v497
        %v501 = vmul.f32 %v486, %v494
        %v502 = vmul.f32 %v487, %v498
        %v503 = vadd.f32 %v479, %v501
        %v504 = vadd.f32 %v480, %v502
        %505 = vrot.lane.b32.xlu0 %v350, 112
        %v506 = vpop.permute.xlu0 %505
        %507 = vrot.lane.b32.xlu0 %v352, 112
        %v508 = vpop.permute.xlu0 %507
        %vm509 = vcmp.lt.s32.totalorder %v365, 112
        %v510 = vsel %vm509, %v506, %v508
        %v511 = vsel %vm509, %v508, %v506
        %s512 = scalar_lea.vmem %s3, 7
        %v513 = vld [vmem:[%s512] ss:$8 sm:$0x3]
        %v515 = vlaneseq
        %v516 = vshrl.u32 %v515, 7
        %v517 = vsub.s32 0, %v516
        %v518 = vrot.slane %v513, %v517
        %v519 = vlaneseq
        %v520 = vshrl.u32 %v519, 7
        %v521 = vsub.s32 1, %v520
        %v522 = vrot.slane %v513, %v521
        %v525 = vmul.f32 %v510, %v518
        %v526 = vmul.f32 %v511, %v522
        %v527 = vadd.f32 %v503, %v525
        %v528 = vadd.f32 %v504, %v526
        %529 = vrot.lane.b32.xlu0 %v356, 111
        %v530 = vpop.permute.xlu0 %529
        %531 = vrot.lane.b32.xlu0 %v358, 111
        %v532 = vpop.permute.xlu0 %531
        %vm533 = vcmp.lt.s32.totalorder %v365, 111
        %v534 = vsel %vm533, %v530, %v532
        %v535 = vsel %vm533, %v532, %v530
        %s536 = scalar_lea.vmem %s3, 16
        %v537 = vld [vmem:[%s536] ss:$8 sm:$0x3]
        %v539 = vlaneseq
        %v540 = vshrl.u32 %v539, 7
        %v541 = vsub.s32 0, %v540
        %v542 = vrot.slane %v537, %v541
        %v543 = vlaneseq
        %v544 = vshrl.u32 %v543, 7
        %v545 = vsub.s32 1, %v544
        %v546 = vrot.slane %v537, %v545
        %v549 = vmul.f32 %v534, %v542
        %v550 = vmul.f32 %v535, %v546
        %v551 = vadd.f32 %v527, %v549
        %v552 = vadd.f32 %v528, %v550
        %v553 = vld [vmem:[%s2] sm:$0xf]
        %555 = vset.pattern.permute.xlu0 0
        %556 = vperm.xlu0 %555, %v553
        %v557 = vpop.permute.xlu0 %556
        %v559 = vadd.f32 %v551, %v557
        %v560 = vadd.f32 %v552, %v557
        %v562 = vadd.f32 %v559, %v196
        %v563 = vadd.f32 %v560, %v207
        %v564 = vmul.f32 %v562, %v562
        %v565 = vmul.f32 %v563, %v563
        %v566 = vsel %vm236, %v564, 0.0
        %v567 = vrot.slane %v566, 4
        %v568 = vadd.f32 %v566, %v567
        %v569 = vrot.slane %v568, 2
        %v570 = vadd.f32 %v568, %v569
        %v571 = vrot.slane %v570, 1
        %v572 = vadd.f32 %v570, %v571
        %v573 = vsel %vm236, %v565, 0.0
        %v574 = vrot.slane %v573, 4
        %v575 = vadd.f32 %v573, %v574
        %v576 = vrot.slane %v575, 2
        %v577 = vadd.f32 %v575, %v576
        %v578 = vrot.slane %v577, 1
        %v579 = vadd.f32 %v577, %v578
        %v580 = vmax.f32 %v572, 1e-24
        %v581 = vmax.f32 %v579, 1e-24
        %v582 = vrsqrt.pop %v580
        %v583 = vrsqrt.pop %v581
        %v584 = vmul.f32 %v562, %v582
        %v585 = vmul.f32 %v563, %v583
        %v588 = vcombine.low %v584, %v585
        %590 = vst [vmem:[%s190] sm:$0xff] %v588
        %s591 = sand.u32 %s115, 1
        %s592 = scalar_lea.sflag [#allocation3], %s591
        %s593 = sand.u32 %s115, 1
        %s594 = smul.addr %s593, 8
        %s595 = scalar_lea.vmem [#allocation2], %s594
        // Predicated region
        $region37: #{tpu_custom_call.1} parent=35 // pred_check
          %p596 = pneg %p125
        $region38: #{tpu_custom_call.1} parent=35 // pred_check_branch
          %598 = sbr.rel (%p596) target = $region40
        $region39: #{tpu_custom_call.1} parent=35 // pred_region
          %s600 = ssub.s32 128, 128
          %601 = vsyncadd %s592, %s600
          %s602 = smul.addr %s18, 2
          %s603 = smul.addr %s602, 64
          %s604 = scalar_lea.hbm %s4, %s603
          %s606 = sshll.u32 %s595, 4
          %s607 = int_to_ptr.vmem [resolvable:$true] %s606
          %609 = dma.vmem_to_hbm [thread:$0]  %s607, 128, %s604, %s592
        $region40: #{tpu_custom_call.1} parent=35 // pred_fallthru
          _
      $region36: #{tpu_custom_call.1} parent=5 // pred_fallthru
        _
      %p610 = scmp.le.s32.totalorder 2, %s13
      // Predicated region
      $region41: #{tpu_custom_call.1} parent=5 // pred_check
        %p611 = pneg %p610
      $region42: #{tpu_custom_call.1} parent=5 // pred_check_branch
        %613 = sbr.rel (%p611) target = $region44
      $region43: #{tpu_custom_call.1} parent=5 // pred_region
        %s614 = ssub.s32 %s13, 2
        // Predicated region
        $region45: #{tpu_custom_call.1} parent=43 // pred_check
          %p615 = pneg %p131
        $region46: #{tpu_custom_call.1} parent=43 // pred_check_branch
          %617 = sbr.rel (%p615) target = $region48
        $region47: #{tpu_custom_call.1} parent=43 // pred_region
          %s618 = sand.u32 %s116, 1
          %s619 = scalar_lea.sflag [#allocation3], %s618
          %s620 = sand.u32 %s116, 1
          %s621 = smul.addr %s620, 8
          %s622 = scalar_lea.vmem [#allocation2], %s621
          %623 = dma.done %s619, 128
        $region48: #{tpu_custom_call.1} parent=43 // pred_fallthru
          _
      $region44: #{tpu_custom_call.1} parent=5 // pred_fallthru
        _
    $region6: #{tpu_custom_call.1} parent=1 // loop_footer
      %s17 = sadd.s32 1, %s13
    $region7: #{tpu_custom_call.1} parent=1 // loop_footer_branch
      %12 = sbr.rel target = $region3
    $region8: #{tpu_custom_call.1} parent=1 // loop_exit
      _
    %624 = vsyncpa [#allocation3], 1
    %s625 = scalar_lea.sflag [#allocation3], 1
    %626 = vsyncpa %s625, 1

</llo_original>
